<compile_context>
chip_gen: v6e
topology: v6e:2x2x1
jax: 0.10.0
libtpu: 0.0.40
codegen_flags: <defaults>
</compile_context>

<pallas_src>
import jax
import jax.numpy as jnp
from jax.experimental import pallas as pl
from jax.experimental.pallas import tpu as pltpu


def _value_decoder_kernel(x_ref, w_ref, o_ref):
    # x_ref: (TM, H) block in VMEM, w_ref: (1, H) lane-dense, o_ref: (TM, 1)
    x = x_ref[...]
    w = w_ref[...]
    # VPU elementwise multiply + XLU lane reduction; output width is 1 so the
    # MXU would be ~1/256 utilized anyway and the kernel is mem-bound by ~10x.
    o_ref[...] = jnp.sum(x * w, axis=-1, keepdims=True).astype(o_ref.dtype)


def _choose_tm(M, H, itemsize):
    """Pick a row-tile size: multiple of 8, VMEM-safe when double-buffered."""
    # Target <= ~8 MiB per x tile so 2x (double buffer) stays well under the
    # 32 MiB scoped-VMEM limit we request (safe on v5e/v6e/v7x).
    per_tile_budget = 8 * 1024 * 1024
    rows = per_tile_budget // max(H * itemsize, 1)
    tm = max(8, min(2048, rows))
    tm = (tm // 8) * 8
    # Don't exceed the (8-rounded) number of rows we actually have.
    m_rounded = ((M + 7) // 8) * 8
    tm = min(tm, m_rounded)
    return max(tm, 8)


def value_decoder_forward(hidden_states, weight):
    """hidden_states: (..., H); weight: (1, H) (PyTorch nn.Linear layout)."""
    orig_shape = hidden_states.shape
    H = orig_shape[-1]
    x2d = hidden_states.reshape(-1, H)          # (M, H)
    w2d = weight.reshape(1, H)                  # keep lane-dense (1, H)
    M = x2d.shape[0]
    itemsize = jnp.dtype(x2d.dtype).itemsize

    TM = _choose_tm(M, H, itemsize)
    num_tiles = pl.cdiv(M, TM)
    M_pad = num_tiles * TM
    if M_pad != M:
        # Zero-pad the tail tile; padded rows produce zeros and are sliced off.
        x2d = jnp.pad(x2d, ((0, M_pad - M), (0, 0)))

    out = pl.pallas_call(
        _value_decoder_kernel,
        out_shape=jax.ShapeDtypeStruct((M_pad, 1), hidden_states.dtype),
        grid_spec=pltpu.PrefetchScalarGridSpec(
            num_scalar_prefetch=0,
            grid=(num_tiles,),
            in_specs=[
                pl.BlockSpec((TM, H), lambda i: (i, 0)),   # streamed x tiles
                pl.BlockSpec((1, H), lambda i: (0, 0)),    # tiny resident weight
            ],
            out_specs=pl.BlockSpec((TM, 1), lambda i: (i, 0)),
        ),
        compiler_params=pltpu.CompilerParams(
            dimension_semantics=("parallel",),             # shard across TCs on v7x
            vmem_limit_bytes=32 * 1024 * 1024,
        ),
        cost_estimate=pl.CostEstimate(
            flops=2 * M_pad * H,
            transcendentals=0,
            bytes_accessed=itemsize * (M_pad * H + H + M_pad),
        ),
    )(x2d, w2d)

    if M_pad != M:
        out = out[:M]
    return out.reshape(*orig_shape[:-1], 1)


if __name__ == "__main__":
    key = jax.random.PRNGKey(0)
    k_x, k_w = jax.random.split(key)

    batch, seq, hidden = 2, 8, 32
    # Deterministic synthetic inputs / params (nn.Linear weight shape = (1, hidden)).
    hidden_states = jax.random.normal(k_x, (batch, seq, hidden), dtype=jnp.float32)
    bound = 1.0 / (hidden ** 0.5)
    weight = jax.random.uniform(
        k_w, (1, hidden), minval=-bound, maxval=bound, dtype=jnp.float32
    )

    out = value_decoder_forward(hidden_states, weight)
    out = jax.block_until_ready(out)

    # Reference check in plain JAX (same semantics as torch.nn.Linear, bias=False).
    ref = hidden_states @ weight.T
    assert out.shape == (batch, seq, 1), out.shape
    assert jnp.allclose(out, ref, atol=1e-5, rtol=1e-5)

    print("KERNEL_OK")
</pallas_src>

<mosaic_0001>
module attributes {stable_mosaic.version = 11 : i64} {
  func.func @_value_decoder_kernel(%arg0: i32, %arg1: memref<16x32xf32, #tpu.memory_space<vmem>>, %arg2: memref<1x32xf32, #tpu.memory_space<vmem>>, %arg3: memref<16x1xf32, #tpu.memory_space<vmem>>) attributes {dimension_semantics = [#tpu.dimension_semantics<parallel>], iteration_bounds = array<i64: 1>, scalar_prefetch = 0 : i64, scratch_operands = 0 : i64, tpu.core_type = #tpu.core_type<tc>, window_params = [{transform_indices = @transform_0, window_bounds = array<i64: 16, 32>}, {pipeline_mode = #tpu.pipeline_mode<synchronous>, transform_indices = @transform_1, window_bounds = array<i64: 1, 32>}, {transform_indices = @transform_2, window_bounds = array<i64: 16, 1>}]} {
    %c0 = arith.constant 0 : index
    %c0_0 = arith.constant 0 : index
    %0 = vector.load %arg1[%c0, %c0_0] : memref<16x32xf32, #tpu.memory_space<vmem>>, vector<16x32xf32>
    %c0_1 = arith.constant 0 : index
    %c0_2 = arith.constant 0 : index
    %1 = vector.load %arg2[%c0_1, %c0_2] : memref<1x32xf32, #tpu.memory_space<vmem>>, vector<1x32xf32>
    %2 = vector.broadcast %1 : vector<1x32xf32> to vector<16x32xf32>
    %3 = arith.mulf %0, %2 : vector<16x32xf32>
    %cst = arith.constant dense<0.000000e+00> : vector<16xf32>
    %4 = vector.multi_reduction <add>, %3, %cst [1] : vector<16x32xf32> to vector<16xf32>
    %5 = vector.shape_cast %4 : vector<16xf32> to vector<16x1xf32>
    %c0_3 = arith.constant 0 : index
    %c0_4 = arith.constant 0 : index
    %6 = vector.load %arg3[%c0_3, %c0_4] : memref<16x1xf32, #tpu.memory_space<vmem>>, vector<16x1xf32>
    tpu.vector_store %arg3[%c0_3, %c0_4], %5 {strides = array<i32>} : memref<16x1xf32, #tpu.memory_space<vmem>>, vector<16x1xf32>,
    return
  }
  func.func @transform_0(%arg0: i32) -> (i32, i32) {
    %c0_i32 = arith.constant 0 : i32
    %c0_i32_0 = arith.constant 0 : i32
    return %arg0, %c0_i32 : i32, i32
  }
  func.func @transform_1(%arg0: i32) -> (i32, i32) {
    %c0_i32 = arith.constant 0 : i32
    %c0_i32_0 = arith.constant 0 : i32
    %c0_i32_1 = arith.constant 0 : i32
    return %c0_i32, %c0_i32_0 : i32, i32
  }
  func.func @transform_2(%arg0: i32) -> (i32, i32) {
    %c0_i32 = arith.constant 0 : i32
    %c0_i32_0 = arith.constant 0 : i32
    return %arg0, %c0_i32 : i32, i32
  }
}

</mosaic_0001>

<llo_original>
// kernel: tpu_custom_call.1
$region0: #{tpu_custom_call.1}
  #allocation0 [shape = 'u32[]', space=smem, size = 0x4, offset = 0x4, fixed_abs, tag = 'smem constant byte address 0x4 - core index']
  #allocation1 [shape = 'u32[144,128]{1,0:T(1,128)}', space=vmem, size = 0x12000, scoped, tag = 'internal scratch']
  %s0 = inlined_call_operand.hbm [shape: f32[16,32], index: 0, kind: input, shape index: {}]
  %s1 = inlined_call_operand.vmem [shape: f32[1,32], index: 1, kind: input, shape index: {}]
  %s2 = inlined_call_operand.vmem [shape: f32[16,1], index: 2, kind: output, shape index: {}]
  %s3 = sld [smem:[#allocation0]]
  $region22: #{tpu_custom_call.1} parent=0
    _
  %s5 = ssub.s32 1, %s3
  %s6 = scalar_select 0, %s5, %s3
  $region1: #{tpu_custom_call.1} parent=0
    #allocation2 [shape = 'u8[8192]{0}', space=vmem, size = 0x2000, scoped, tag = 'input window, operand 0, single buffered']
    #allocation3 [shape = 's32[1]{0}', space=sflag, size = 0x4, scoped, tag = 'scoped memory for tpu_custom_call.1']
    %7 = vsyncpa [#allocation3], 0
    // Predicated region
    $region2: #{tpu_custom_call.1} parent=1 // pred_check
      _
    $region3: #{tpu_custom_call.1} parent=1 // pred_check_branch
      %9 = sbr.rel (0) target = $region5
    $region4: #{tpu_custom_call.1} parent=1 // pred_region
      %s11 = ssub.s32 256, 256
      %12 = vsyncadd [#allocation3], %s11
      %s13 = sshll.u32 [#allocation2], 4
      %s14 = int_to_ptr.vmem [resolvable:$true] %s13
      %19 = dma.hbm_to_vmem [thread:$0]  %s0, 256, %s14, [#allocation3], 128, 128, 8
    $region5: #{tpu_custom_call.1} parent=1 // pred_fallthru
      _
    // Predicated region
    $region6: #{tpu_custom_call.1} parent=1 // pred_check
      _
    $region7: #{tpu_custom_call.1} parent=1 // pred_check_branch
      %21 = sbr.rel (0) target = $region9
    $region8: #{tpu_custom_call.1} parent=1 // pred_region
      _
    $region9: #{tpu_custom_call.1} parent=1 // pred_fallthru
      _
    // Predicated region
    $region10: #{tpu_custom_call.1} parent=1 // pred_check
      _
    $region11: #{tpu_custom_call.1} parent=1 // pred_check_branch
      %23 = sbr.rel (0) target = $region13
    $region12: #{tpu_custom_call.1} parent=1 // pred_region
      %24 = dma.done [#allocation3], 256
    $region13: #{tpu_custom_call.1} parent=1 // pred_fallthru
      _
    %v25 = vld [vmem:[#allocation2] sm:$0xff]
    %v26 = vld [vmem:[#allocation2 + $0x8] sm:$0xff]
    %v27 = vld [vmem:[%s1] sm:$0x1]
    %v29 = vlaneseq
    %v30 = vshrl.u32 %v29, 7
    %v31 = vsub.s32 0, %v30
    %v32 = vrot.slane %v27, %v31
    %v34 = vmul.f32 %v25, %v32
    %v35 = vmul.f32 %v26, %v32
    %vm36 = vcmask 261120
    %v37 = vsel %vm36, %v34, 0.0
    %38 = vadd.xlane.f32.xlu0 %v37
    %v39 = vpop.xlane.xlu0 %38
    %v40 = vsel %vm36, %v35, 0.0
    %41 = vadd.xlane.f32.xlu0 %v40
    %v42 = vpop.xlane.xlu0 %41
    %vm43 = vcmask 7168
    %44 = vst.msk [vmem:[%s2] sm:$0xff] %vm43, %v39
    %45 = vst.msk [vmem:[%s2 + $0x8] sm:$0xff] %vm43, %v42
    // Predicated region
    $region14: #{tpu_custom_call.1} parent=1 // pred_check
      _
    $region15: #{tpu_custom_call.1} parent=1 // pred_check_branch
      %47 = sbr.rel (0) target = $region17
    $region16: #{tpu_custom_call.1} parent=1 // pred_region
      _
    $region17: #{tpu_custom_call.1} parent=1 // pred_fallthru
      _
    // Predicated region
    $region18: #{tpu_custom_call.1} parent=1 // pred_check
      _
    $region19: #{tpu_custom_call.1} parent=1 // pred_check_branch
      %49 = sbr.rel (0) target = $region21
    $region20: #{tpu_custom_call.1} parent=1 // pred_region
      _
    $region21: #{tpu_custom_call.1} parent=1 // pred_fallthru
      _
    %50 = vsyncpa [#allocation3], 1

</llo_original>
